<compile_context>
chip_gen: v7x
topology: tpu7x:2x2x1
jax: 0.10.0
libtpu: 0.0.40
codegen_flags: <defaults>
</compile_context>

<pallas_src>
import jax
import jax.numpy as jnp
from jax import lax
from jax.experimental import pallas as pl
from jax.experimental.pallas import tpu as pltpu


# ------------------------------- Constants --------------------------------- #

_LANE = 128
_VMEM_BLOCK_BUDGET = 16 * 1024 * 1024   # double-buffered block budget (v7x-safe)
_VMEM_LIMIT_BYTES = 28 * 1024 * 1024    # > v5e's 16 MiB scoped default, < 64 MiB


def _ceil_div(a, b):
    return -(-a // b)


def _pick_tile(P, K, C2):
    """Pixel-tile length (multiple of 128), tile count, and padded P.

    Budget counts the double-buffered per-lane bytes of the heavier pass
    (pass 2: bf16 xT block + f32 output block).
    """
    per_lane = 2 * (K * 2 + C2 * 4)
    cap = max(_LANE, (_VMEM_BLOCK_BUDGET // per_lane) // _LANE * _LANE)
    n_tiles = max(1, _ceil_div(P, cap))
    tp = _ceil_div(_ceil_div(P, n_tiles), _LANE) * _LANE
    return tp, n_tiles, tp * n_tiles


# ----------------------------- Pallas kernels ------------------------------ #

def conv_stats_kernel(x_ref, w_ref, s_ref, ss_ref):
    """Stats-only pass: 1x1 conv tile on the MXU, reduced to per-channel
    [sum, sum-of-squares], accumulated in the resident output blocks across
    the pixel-tile grid axis (written back to HBM once per batch index).

    x_ref : (1, K, TP)  bf16   space-to-depth tile, channels on sublanes,
                               pixels on lanes
    w_ref : (C2, K)     bf16   conv weight
    s_ref : (1, C2, 1)  f32    per-batch sum accumulator
    ss_ref: (1, C2, 1)  f32    per-batch sum-of-squares accumulator
    """
    j = pl.program_id(1)
    y = jnp.dot(w_ref[...], x_ref[0],
                preferred_element_type=jnp.float32)           # (C2, TP) f32, MXU
    s = jnp.sum(y, axis=1, keepdims=True)                     # (C2, 1) XLU reduce
    ss = jnp.sum(y * y, axis=1, keepdims=True)                # (C2, 1)

    @pl.when(j == 0)
    def _():
        s_ref[0] = s
        ss_ref[0] = ss

    @pl.when(j > 0)
    def _():
        s_ref[0] = s_ref[0] + s
        ss_ref[0] = ss_ref[0] + ss


def conv_bn_relu_kernel(x_ref, w_ref, aff_ref, o_ref):
    """Fused 1x1 conv (recomputed on the MXU) + folded BN affine + ReLU.

    x_ref  : (1, K, TP)  bf16
    w_ref  : (C2, K)     bf16
    aff_ref: (C2, 2)     f32   column 0 = scale, column 1 = shift
    o_ref  : (1, C2, TP) f32   lane-dense output tile
    """
    y = jnp.dot(w_ref[...], x_ref[0],
                preferred_element_type=jnp.float32)           # (C2, TP) f32
    scale = aff_ref[:, 0:1]                                   # (C2, 1)
    shift = aff_ref[:, 1:2]                                   # (C2, 1)
    o_ref[0] = jnp.maximum(y * scale + shift, 0.0)


# ------------------------------ Forward pass ------------------------------- #

def spdconv2d_forward(x, params, *, eps=1e-5):
    """x: [N, C1, H, W] float32 (NCHW, H and W even). Returns [N, C2, H//2, W//2]."""
    N, C1, H, W = x.shape
    assert H % 2 == 0 and W % 2 == 0, "SPDConv_2D needs even spatial dims"
    H2, W2 = H // 2, W // 2
    P = H2 * W2
    K = 4 * C1
    C2 = params["conv_w"].shape[0]

    tp, n_tiles, P_pad = _pick_tile(P, K, C2)

    # Single fused XLA rearrange (read x f32 once, write bf16 once):
    # space-to-depth in the torch.cat channel order k = (2*dw + dh)*C1 + c,
    # pixels flattened row-major, channels on sublanes / pixels on lanes.
    xT = jnp.transpose(
        x.reshape(N, C1, H2, 2, W2, 2), (0, 5, 3, 1, 2, 4)
    ).reshape(N, K, P).astype(jnp.bfloat16)
    if P_pad != P:
        xT = jnp.pad(xT, ((0, 0), (0, 0), (0, P_pad - P)))

    w_bf16 = params["conv_w"].reshape(C2, K).astype(jnp.bfloat16)
    # Conv bias intentionally dropped: it cancels exactly against the batch
    # mean subtracted by train-mode BatchNorm (forward output unchanged).

    cparams_p1 = pltpu.CompilerParams(
        dimension_semantics=("parallel", "arbitrary"),
        vmem_limit_bytes=_VMEM_LIMIT_BYTES)
    cparams_p2 = pltpu.CompilerParams(
        dimension_semantics=("parallel", "parallel"),
        vmem_limit_bytes=_VMEM_LIMIT_BYTES)

    # Pass 1: batch statistics only (no activation intermediate in HBM).
    s_out, ss_out = pl.pallas_call(
        conv_stats_kernel,
        out_shape=(
            jax.ShapeDtypeStruct((N, C2, 1), jnp.float32),
            jax.ShapeDtypeStruct((N, C2, 1), jnp.float32),
        ),
        grid_spec=pltpu.PrefetchScalarGridSpec(
            num_scalar_prefetch=0,
            grid=(N, n_tiles),
            in_specs=[
                pl.BlockSpec((1, K, tp), lambda n, j: (n, 0, j)),
                pl.BlockSpec((C2, K), lambda n, j: (0, 0)),
            ],
            out_specs=(
                pl.BlockSpec((1, C2, 1), lambda n, j: (n, 0, 0)),
                pl.BlockSpec((1, C2, 1), lambda n, j: (n, 0, 0)),
            ),
        ),
        compiler_params=cparams_p1,
    )(xT, w_bf16)

    # Tiny glue: batch mean / biased variance (PyTorch train-mode BN), folded
    # into a single per-channel scale/shift.
    m_count = jnp.float32(N * P)
    mean = jnp.sum(s_out, axis=0)[:, 0] / m_count             # (C2,)
    ex2 = jnp.sum(ss_out, axis=0)[:, 0] / m_count
    var = jnp.maximum(ex2 - mean * mean, 0.0)
    # TODO(synk): E[y^2]-E[y]^2 in f32 can cancel for very large N*P; switch to
    #             centered (Chan) per-tile partials if that ever matters.
    inv_std = lax.rsqrt(var + eps)
    scale = params["bn_gamma"] * inv_std
    shift = params["bn_beta"] - mean * scale
    aff = jnp.stack([scale, shift], axis=1)                    # (C2, 2) f32

    # Pass 2: recompute the cheap matmul, apply folded BN + ReLU, write the
    # final output exactly once (lane-dense, unmasked full-lane stores).
    out3 = pl.pallas_call(
        conv_bn_relu_kernel,
        out_shape=jax.ShapeDtypeStruct((N, C2, P_pad), jnp.float32),
        grid_spec=pltpu.PrefetchScalarGridSpec(
            num_scalar_prefetch=0,
            grid=(N, n_tiles),
            in_specs=[
                pl.BlockSpec((1, K, tp), lambda n, j: (n, 0, j)),
                pl.BlockSpec((C2, K), lambda n, j: (0, 0)),
                pl.BlockSpec((C2, 2), lambda n, j: (0, 0)),
            ],
            out_specs=pl.BlockSpec((1, C2, tp), lambda n, j: (n, 0, j)),
        ),
        compiler_params=cparams_p2,
    )(xT, w_bf16, aff)

    if P_pad != P:
        out3 = out3[:, :, :P]
    return out3.reshape(N, C2, H2, W2)                         # NCHW


# --------------------------- Pure-JAX reference ----------------------------- #

def reference(x, params, eps=1e-5, cast_inputs_to_bf16=False):
    xs = jnp.concatenate(
        [x[:, :, ::2, ::2], x[:, :, 1::2, ::2],
         x[:, :, ::2, 1::2], x[:, :, 1::2, 1::2]], axis=1)
    w = params["conv_w"][:, :, 0, 0]                           # [C2, K]
    if cast_inputs_to_bf16:
        xs = xs.astype(jnp.bfloat16).astype(jnp.float32)
        w = w.astype(jnp.bfloat16).astype(jnp.float32)
    y = jnp.einsum("nkhw,ck->nchw", xs, w) + params["conv_b"][None, :, None, None]
    mean = y.mean(axis=(0, 2, 3))
    var = y.var(axis=(0, 2, 3))                                # biased, like torch BN
    yhat = (y - mean[None, :, None, None]) / jnp.sqrt(var + eps)[None, :, None, None]
    out = yhat * params["bn_gamma"][None, :, None, None] + params["bn_beta"][None, :, None, None]
    return jnp.maximum(out, 0.0)


# --------------------------------- Main ------------------------------------ #

if __name__ == "__main__":
    key = jax.random.PRNGKey(0)
    kx, kw, kb, kg, kbt = jax.random.split(key, 5)

    N, C1, H, W = 2, 4, 16, 16
    C2 = 8

    x = jax.random.normal(kx, (N, C1, H, W), dtype=jnp.float32)

    # Deterministic synthetic parameters (shapes follow nn.Conv2d(4*C1, C2, 1)
    # and nn.BatchNorm2d(C2)).
    params = {
        "conv_w": 0.1 * jax.random.normal(kw, (C2, 4 * C1, 1, 1), jnp.float32),
        "conv_b": 0.1 * jax.random.normal(kb, (C2,), jnp.float32),
        "bn_gamma": 1.0 + 0.1 * jax.random.normal(kg, (C2,), jnp.float32),
        "bn_beta": 0.1 * jax.random.normal(kbt, (C2,), jnp.float32),
    }

    out = jax.block_until_ready(jax.jit(spdconv2d_forward)(x, params))
    assert out.shape == (N, C2, H // 2, W // 2), out.shape

    # Tight structural check against a bf16-input-consistent f32 reference
    # (differences are only accumulation order / affine algebra).
    ref_bf16 = reference(x, params, cast_inputs_to_bf16=True)
    assert jnp.allclose(out, ref_bf16, atol=5e-3, rtol=5e-3), \
        "mismatch vs bf16-consistent reference"

    # Loose sanity check against the full-f32 module math (slack accounts for
    # the intentional bf16 rounding of the x / weight streams).
    ref_f32 = reference(x, params, cast_inputs_to_bf16=False)
    assert jnp.allclose(out, ref_f32, atol=1e-1, rtol=1e-1), \
        "mismatch vs f32 reference"

    print("KERNEL_OK")
</pallas_src>

<mosaic_0001>
module attributes {stable_mosaic.version = 11 : i64} {
  func.func @conv_stats_kernel(%arg0: i32, %arg1: i32, %arg2: memref<1x16x128xbf16, #tpu.memory_space<vmem>>, %arg3: memref<8x16xbf16, #tpu.memory_space<vmem>>, %arg4: memref<1x8x1xf32, #tpu.memory_space<vmem>>, %arg5: memref<1x8x1xf32, #tpu.memory_space<vmem>>) attributes {dimension_semantics = [#tpu.dimension_semantics<parallel>, #tpu.dimension_semantics<arbitrary>], iteration_bounds = array<i64: 2, 1>, scalar_prefetch = 0 : i64, scratch_operands = 0 : i64, tpu.core_type = #tpu.core_type<tc>, window_params = [{transform_indices = @transform_0, window_bounds = array<i64: 1, 16, 128>}, {pipeline_mode = #tpu.pipeline_mode<synchronous>, transform_indices = @transform_1, window_bounds = array<i64: 8, 16>}, {transform_indices = @transform_2, window_bounds = array<i64: 1, 8, 1>}, {transform_indices = @transform_3, window_bounds = array<i64: 1, 8, 1>}]} {
    %c0 = arith.constant 0 : index
    %c0_0 = arith.constant 0 : index
    %0 = vector.load %arg3[%c0, %c0_0] : memref<8x16xbf16, #tpu.memory_space<vmem>>, vector<8x16xbf16>
    %c0_1 = arith.constant 0 : index
    %c0_2 = arith.constant 0 : index
    %c0_3 = arith.constant 0 : index
    %1 = vector.load %arg2[%c0_1, %c0_2, %c0_3] : memref<1x16x128xbf16, #tpu.memory_space<vmem>>, vector<1x16x128xbf16>
    %2 = vector.shape_cast %1 : vector<1x16x128xbf16> to vector<16x128xbf16>
    %cst = arith.constant dense<0.000000e+00> : vector<8x128xf32>
    %3 = tpu.matmul %0, %2, %cst {dimension_numbers = #tpu.dot_dimension_numbers<[1], [0], [0], [1], [0, 0, 1, 1], [], []>} : vector<8x16xbf16>, vector<16x128xbf16>, vector<8x128xf32> -> vector<8x128xf32>
    %cst_4 = arith.constant dense<0.000000e+00> : vector<8xf32>
    %4 = vector.multi_reduction <add>, %3, %cst_4 [1] : vector<8x128xf32> to vector<8xf32>
    %5 = vector.shape_cast %4 : vector<8xf32> to vector<8x1xf32>
    %6 = arith.mulf %3, %3 : vector<8x128xf32>
    %cst_5 = arith.constant dense<0.000000e+00> : vector<8xf32>
    %7 = vector.multi_reduction <add>, %6, %cst_5 [1] : vector<8x128xf32> to vector<8xf32>
    %8 = vector.shape_cast %7 : vector<8xf32> to vector<8x1xf32>
    %c0_i32 = arith.constant 0 : i32
    %9 = arith.cmpi eq, %arg1, %c0_i32 : i32
    %10 = arith.extui %9 : i1 to i32
    %c0_i32_6 = arith.constant 0 : i32
    %11 = arith.cmpi ne, %10, %c0_i32_6 : i32
    scf.if %11 {
      %c0_9 = arith.constant 0 : index
      %c0_10 = arith.constant 0 : index
      %c0_11 = arith.constant 0 : index
      %15 = vector.load %arg4[%c0_9, %c0_10, %c0_11] : memref<1x8x1xf32, #tpu.memory_space<vmem>>, vector<1x8x1xf32>
      %16 = vector.shape_cast %15 : vector<1x8x1xf32> to vector<8x1xf32>
      %17 = vector.shape_cast %5 : vector<8x1xf32> to vector<1x8x1xf32>
      tpu.vector_store %arg4[%c0_9, %c0_10, %c0_11], %17 {strides = array<i32>} : memref<1x8x1xf32, #tpu.memory_space<vmem>>, vector<1x8x1xf32>,
      %c0_12 = arith.constant 0 : index
      %c0_13 = arith.constant 0 : index
      %c0_14 = arith.constant 0 : index
      %18 = vector.load %arg5[%c0_12, %c0_13, %c0_14] : memref<1x8x1xf32, #tpu.memory_space<vmem>>, vector<1x8x1xf32>
      %19 = vector.shape_cast %18 : vector<1x8x1xf32> to vector<8x1xf32>
      %20 = vector.shape_cast %8 : vector<8x1xf32> to vector<1x8x1xf32>
      tpu.vector_store %arg5[%c0_12, %c0_13, %c0_14], %20 {strides = array<i32>} : memref<1x8x1xf32, #tpu.memory_space<vmem>>, vector<1x8x1xf32>,
    } else {
    }
    %c0_i32_7 = arith.constant 0 : i32
    %12 = arith.cmpi sgt, %arg1, %c0_i32_7 : i32
    %13 = arith.extui %12 : i1 to i32
    %c0_i32_8 = arith.constant 0 : i32
    %14 = arith.cmpi ne, %13, %c0_i32_8 : i32
    scf.if %14 {
      %c0_9 = arith.constant 0 : index
      %c0_10 = arith.constant 0 : index
      %c0_11 = arith.constant 0 : index
      %15 = vector.load %arg4[%c0_9, %c0_10, %c0_11] : memref<1x8x1xf32, #tpu.memory_space<vmem>>, vector<1x8x1xf32>
      %16 = vector.shape_cast %15 : vector<1x8x1xf32> to vector<8x1xf32>
      %17 = arith.addf %16, %5 : vector<8x1xf32>
      %c0_12 = arith.constant 0 : index
      %c0_13 = arith.constant 0 : index
      %c0_14 = arith.constant 0 : index
      %18 = vector.load %arg4[%c0_12, %c0_13, %c0_14] : memref<1x8x1xf32, #tpu.memory_space<vmem>>, vector<1x8x1xf32>
      %19 = vector.shape_cast %18 : vector<1x8x1xf32> to vector<8x1xf32>
      %20 = vector.shape_cast %17 : vector<8x1xf32> to vector<1x8x1xf32>
      tpu.vector_store %arg4[%c0_12, %c0_13, %c0_14], %20 {strides = array<i32>} : memref<1x8x1xf32, #tpu.memory_space<vmem>>, vector<1x8x1xf32>,
      %c0_15 = arith.constant 0 : index
      %c0_16 = arith.constant 0 : index
      %c0_17 = arith.constant 0 : index
      %21 = vector.load %arg5[%c0_15, %c0_16, %c0_17] : memref<1x8x1xf32, #tpu.memory_space<vmem>>, vector<1x8x1xf32>
      %22 = vector.shape_cast %21 : vector<1x8x1xf32> to vector<8x1xf32>
      %23 = arith.addf %22, %8 : vector<8x1xf32>
      %c0_18 = arith.constant 0 : index
      %c0_19 = arith.constant 0 : index
      %c0_20 = arith.constant 0 : index
      %24 = vector.load %arg5[%c0_18, %c0_19, %c0_20] : memref<1x8x1xf32, #tpu.memory_space<vmem>>, vector<1x8x1xf32>
      %25 = vector.shape_cast %24 : vector<1x8x1xf32> to vector<8x1xf32>
      %26 = vector.shape_cast %23 : vector<8x1xf32> to vector<1x8x1xf32>
      tpu.vector_store %arg5[%c0_18, %c0_19, %c0_20], %26 {strides = array<i32>} : memref<1x8x1xf32, #tpu.memory_space<vmem>>, vector<1x8x1xf32>,
    } else {
    }
    return
  }
  func.func @transform_0(%arg0: i32, %arg1: i32) -> (i32, i32, i32) {
    %c0_i32 = arith.constant 0 : i32
    %c0_i32_0 = arith.constant 0 : i32
    return %arg0, %c0_i32, %arg1 : i32, i32, i32
  }
  func.func @transform_1(%arg0: i32, %arg1: i32) -> (i32, i32) {
    %c0_i32 = arith.constant 0 : i32
    %c0_i32_0 = arith.constant 0 : i32
    %c0_i32_1 = arith.constant 0 : i32
    return %c0_i32, %c0_i32_0 : i32, i32
  }
  func.func @transform_2(%arg0: i32, %arg1: i32) -> (i32, i32, i32) {
    %c0_i32 = arith.constant 0 : i32
    %c0_i32_0 = arith.constant 0 : i32
    %c0_i32_1 = arith.constant 0 : i32
    return %arg0, %c0_i32, %c0_i32_0 : i32, i32, i32
  }
  func.func @transform_3(%arg0: i32, %arg1: i32) -> (i32, i32, i32) {
    %c0_i32 = arith.constant 0 : i32
    %c0_i32_0 = arith.constant 0 : i32
    %c0_i32_1 = arith.constant 0 : i32
    return %arg0, %c0_i32, %c0_i32_0 : i32, i32, i32
  }
}

module attributes {stable_mosaic.version = 11 : i64} {
  func.func @conv_bn_relu_kernel(%arg0: i32, %arg1: i32, %arg2: memref<1x16x128xbf16, #tpu.memory_space<vmem>>, %arg3: memref<8x16xbf16, #tpu.memory_space<vmem>>, %arg4: memref<8x2xf32, #tpu.memory_space<vmem>>, %arg5: memref<1x8x128xf32, #tpu.memory_space<vmem>>) attributes {dimension_semantics = [#tpu.dimension_semantics<parallel>, #tpu.dimension_semantics<parallel>], iteration_bounds = array<i64: 2, 1>, scalar_prefetch = 0 : i64, scratch_operands = 0 : i64, tpu.core_type = #tpu.core_type<tc>, window_params = [{transform_indices = @transform_0, window_bounds = array<i64: 1, 16, 128>}, {pipeline_mode = #tpu.pipeline_mode<synchronous>, transform_indices = @transform_1, window_bounds = array<i64: 8, 16>}, {pipeline_mode = #tpu.pipeline_mode<synchronous>, transform_indices = @transform_2, window_bounds = array<i64: 8, 2>}, {transform_indices = @transform_3, window_bounds = array<i64: 1, 8, 128>}]} {
    %c0 = arith.constant 0 : index
    %c0_0 = arith.constant 0 : index
    %0 = vector.load %arg3[%c0, %c0_0] : memref<8x16xbf16, #tpu.memory_space<vmem>>, vector<8x16xbf16>
    %c0_1 = arith.constant 0 : index
    %c0_2 = arith.constant 0 : index
    %c0_3 = arith.constant 0 : index
    %1 = vector.load %arg2[%c0_1, %c0_2, %c0_3] : memref<1x16x128xbf16, #tpu.memory_space<vmem>>, vector<1x16x128xbf16>
    %2 = vector.shape_cast %1 : vector<1x16x128xbf16> to vector<16x128xbf16>
    %cst = arith.constant dense<0.000000e+00> : vector<8x128xf32>
    %3 = tpu.matmul %0, %2, %cst {dimension_numbers = #tpu.dot_dimension_numbers<[1], [0], [0], [1], [0, 0, 1, 1], [], []>} : vector<8x16xbf16>, vector<16x128xbf16>, vector<8x128xf32> -> vector<8x128xf32>
    %c0_4 = arith.constant 0 : index
    %c0_5 = arith.constant 0 : index
    %4 = vector.load %arg4[%c0_4, %c0_5] : memref<8x2xf32, #tpu.memory_space<vmem>>, vector<8x1xf32>
    %c0_6 = arith.constant 0 : index
    %c1 = arith.constant 1 : index
    %5 = vector.load %arg4[%c0_6, %c1] : memref<8x2xf32, #tpu.memory_space<vmem>>, vector<8x1xf32>
    %6 = vector.broadcast %4 : vector<8x1xf32> to vector<8x128xf32>
    %7 = arith.mulf %3, %6 : vector<8x128xf32>
    %8 = vector.broadcast %5 : vector<8x1xf32> to vector<8x128xf32>
    %9 = arith.addf %7, %8 : vector<8x128xf32>
    %cst_7 = arith.constant 0.000000e+00 : f32
    %10 = vector.broadcast %cst_7 : f32 to vector<8x128xf32>
    %11 = arith.maximumf %9, %10 : vector<8x128xf32>
    %c0_8 = arith.constant 0 : index
    %c0_9 = arith.constant 0 : index
    %c0_10 = arith.constant 0 : index
    %12 = vector.load %arg5[%c0_8, %c0_9, %c0_10] : memref<1x8x128xf32, #tpu.memory_space<vmem>>, vector<1x8x128xf32>
    %13 = vector.shape_cast %12 : vector<1x8x128xf32> to vector<8x128xf32>
    %14 = vector.shape_cast %11 : vector<8x128xf32> to vector<1x8x128xf32>
    tpu.vector_store %arg5[%c0_8, %c0_9, %c0_10], %14 {strides = array<i32>} : memref<1x8x128xf32, #tpu.memory_space<vmem>>, vector<1x8x128xf32>,
    return
  }
  func.func @transform_0(%arg0: i32, %arg1: i32) -> (i32, i32, i32) {
    %c0_i32 = arith.constant 0 : i32
    %c0_i32_0 = arith.constant 0 : i32
    return %arg0, %c0_i32, %arg1 : i32, i32, i32
  }
  func.func @transform_1(%arg0: i32, %arg1: i32) -> (i32, i32) {
    %c0_i32 = arith.constant 0 : i32
    %c0_i32_0 = arith.constant 0 : i32
    %c0_i32_1 = arith.constant 0 : i32
    return %c0_i32, %c0_i32_0 : i32, i32
  }
  func.func @transform_2(%arg0: i32, %arg1: i32) -> (i32, i32) {
    %c0_i32 = arith.constant 0 : i32
    %c0_i32_0 = arith.constant 0 : i32
    %c0_i32_1 = arith.constant 0 : i32
    return %c0_i32, %c0_i32_0 : i32, i32
  }
  func.func @transform_3(%arg0: i32, %arg1: i32) -> (i32, i32, i32) {
    %c0_i32 = arith.constant 0 : i32
    %c0_i32_0 = arith.constant 0 : i32
    return %arg0, %c0_i32, %arg1 : i32, i32, i32
  }
}

</mosaic_0001>

<llo_original>
// kernel: spdconv2d_forward.3
$region0: #{spdconv2d_forward.3}
  #allocation0 [shape = 'u32[]', space=smem, size = 0x4, offset = 0x4, fixed_abs, tag = 'smem constant byte address 0x4 - core index']
  #allocation1 [shape = 'u32[144,128]{1,0:T(1,128)}', space=vmem, size = 0x12000, scoped, tag = 'internal scratch']
  %s0 = inlined_call_operand.vmem [shape: bf16[2,16,128], index: 0, kind: input, shape index: {}]
  %s1 = inlined_call_operand.vmem [shape: bf16[8,16], index: 1, kind: input, shape index: {}]
  %s2 = inlined_call_operand.vmem [shape: f32[8,2], index: 2, kind: input, shape index: {}]
  %s3 = inlined_call_operand.vmem [shape: f32[2,8,128], index: 3, kind: output, shape index: {}]
  %s4 = sld [smem:[#allocation0]]
  $region45: #{spdconv2d_forward.3} parent=0
    _
  %s6 = ssub.s32 1, %s4
  %s7 = scalar_select 0, %s6, %s4
  loop: start=0, step=1, limit=4
  $region2: #{spdconv2d_forward.3} parent=0 // loop_pre_header
    _
  $region3: #{spdconv2d_forward.3} parent=0 // loop_header
    %s9 = sphi 0, %s13
    %p10 = scmp.ge.s32.totalorder %s9, 4
    %s16 = sphi 0, %s28
    %s17 = sphi 0, %s24
    %s18 = sphi 0, %s16
    %s19 = sphi 0, %s17
    %s20 = sphi 0, %s18
    %s21 = sphi 0, %s19
    %s33 = sphi 0, %s35
    %s36 = sphi 0, %s33
    %s37 = sphi 0, %s36
    %s53 = sphi 0, %s37
    %s57 = sphi 0, %s57
    %s59 = sphi 0, %s57
    %s60 = sphi 0, %s59
    %s74 = sphi 0, %s60
    %s78 = sphi 0, %s78
    %s80 = sphi 0, %s78
    %s81 = sphi 0, %s80
    %s95 = sphi 0, %s81
    %s103 = sphi 0, %s105
    %s106 = sphi 0, %s103
    %s107 = sphi 0, %s106
    %s123 = sphi 0, %s107
  $region4: #{spdconv2d_forward.3} parent=0 // loop_header_branch
    %12 = sbr.rel (%p10) target = $region8
  $region5: #{spdconv2d_forward.3} parent=0 // loop_body
    %s14 = ssub.s32 %s9, 1
    %s15 = ssub.s32 %s9, 2
    %s22 = sadd.s32 1, %s17
    %p23 = scmp.ge.s32.totalorder %s22, 1
    %s24 = scalar_select %p23, 0, %s22
    %s25 = sadd.s32 1, %s16
    %s26 = scalar_select %p23, %s25, %s16
    %p27 = scmp.ge.s32.totalorder %s26, 2
    %s28 = scalar_select %p27, 0, %s26
    %s29 = ssub.s32 %s16, %s28
    %s30 = ssub.s32 %s17, %s24
    %s31 = sor.u32 %s29, %s30
    %p32 = scmp.eq.s32.totalorder %s31, 0
    %s34 = sadd.s32 %s33, 1
    %s35 = scalar_select %p32, %s33, %s34
    %p38 = pneg %p32
    %p39 = scmp.eq.s32.totalorder %s9, 1
    %p40 = por %p38, %p39
    %p41 = scmp.ne.s32.totalorder %s33, %s36
    %p42 = scmp.eq.s32.totalorder %s9, 0
    %p43 = por %p41, %p42
    %p44 = scmp.ne.s32.totalorder %s33, %s36
    %p45 = scmp.eq.s32.totalorder %s14, 1
    %p46 = por %p44, %p45
    %p47 = scmp.ne.s32.totalorder %s36, %s37
    %p48 = scmp.eq.s32.totalorder %s14, 0
    %p49 = por %p47, %p48
    %p50 = scmp.ne.s32.totalorder %s36, %s37
    %p51 = scmp.eq.s32.totalorder %s15, 1
    %p52 = por %p50, %p51
    %p54 = scmp.ne.s32.totalorder %s37, %s53
    %p55 = scmp.eq.s32.totalorder %s15, 0
    %p56 = por %p54, %p55
    %s58 = sadd.s32 %s57, 1
    %p61 = scmp.eq.s32.totalorder %s9, 1
    %p62 = scmp.ne.s32.totalorder %s57, %s59
    %p63 = scmp.eq.s32.totalorder %s9, 0
    %p64 = por %p62, %p63
    %p65 = scmp.ne.s32.totalorder %s57, %s59
    %p66 = scmp.eq.s32.totalorder %s14, 1
    %p67 = por %p65, %p66
    %p68 = scmp.ne.s32.totalorder %s59, %s60
    %p69 = scmp.eq.s32.totalorder %s14, 0
    %p70 = por %p68, %p69
    %p71 = scmp.ne.s32.totalorder %s59, %s60
    %p72 = scmp.eq.s32.totalorder %s15, 1
    %p73 = por %p71, %p72
    %p75 = scmp.ne.s32.totalorder %s60, %s74
    %p76 = scmp.eq.s32.totalorder %s15, 0
    %p77 = por %p75, %p76
    %s79 = sadd.s32 %s78, 1
    %p82 = scmp.eq.s32.totalorder %s9, 1
    %p83 = scmp.ne.s32.totalorder %s78, %s80
    %p84 = scmp.eq.s32.totalorder %s9, 0
    %p85 = por %p83, %p84
    %p86 = scmp.ne.s32.totalorder %s78, %s80
    %p87 = scmp.eq.s32.totalorder %s14, 1
    %p88 = por %p86, %p87
    %p89 = scmp.ne.s32.totalorder %s80, %s81
    %p90 = scmp.eq.s32.totalorder %s14, 0
    %p91 = por %p89, %p90
    %p92 = scmp.ne.s32.totalorder %s80, %s81
    %p93 = scmp.eq.s32.totalorder %s15, 1
    %p94 = por %p92, %p93
    %p96 = scmp.ne.s32.totalorder %s81, %s95
    %p97 = scmp.eq.s32.totalorder %s15, 0
    %p98 = por %p96, %p97
    %s99 = ssub.s32 %s16, %s28
    %s100 = ssub.s32 %s17, %s24
    %s101 = sor.u32 %s99, %s100
    %p102 = scmp.eq.s32.totalorder %s101, 0
    %s104 = sadd.s32 %s103, 1
    %s105 = scalar_select %p102, %s103, %s104
    %p108 = pneg %p102
    %p109 = scmp.eq.s32.totalorder %s9, 1
    %p110 = por %p108, %p109
    %p111 = scmp.ne.s32.totalorder %s103, %s106
    %p112 = scmp.eq.s32.totalorder %s9, 0
    %p113 = por %p111, %p112
    %p114 = scmp.ne.s32.totalorder %s103, %s106
    %p115 = scmp.eq.s32.totalorder %s14, 1
    %p116 = por %p114, %p115
    %p117 = scmp.ne.s32.totalorder %s106, %s107
    %p118 = scmp.eq.s32.totalorder %s14, 0
    %p119 = por %p117, %p118
    %p120 = scmp.ne.s32.totalorder %s106, %s107
    %p121 = scmp.eq.s32.totalorder %s15, 1
    %p122 = por %p120, %p121
    %p124 = scmp.ne.s32.totalorder %s107, %s123
    %p125 = scmp.eq.s32.totalorder %s15, 0
    %p126 = por %p124, %p125
    %p127 = scmp.le.s32.totalorder 1, %s9
    %p128 = scmp.lt.s32.totalorder %s9, 3
    %p129 = pnand %p127, %p128
    %p130 = pneg %p129
    // Predicated region
    $region9: #{spdconv2d_forward.3} parent=5 // pred_check
      _
    $region10: #{spdconv2d_forward.3} parent=5 // pred_check_branch
      %132 = sbr.rel (%p129) target = $region12
    $region11: #{spdconv2d_forward.3} parent=5 // pred_region
      %s133 = ssub.s32 %s9, 1
      // Predicated region
      $region13: #{spdconv2d_forward.3} parent=11 // pred_check
        %p134 = pneg %p70
      $region14: #{spdconv2d_forward.3} parent=11 // pred_check_branch
        %136 = sbr.rel (%p134) target = $region16
      $region15: #{spdconv2d_forward.3} parent=11 // pred_region
        _
      $region16: #{spdconv2d_forward.3} parent=11 // pred_fallthru
        _
      // Predicated region
      $region17: #{spdconv2d_forward.3} parent=11 // pred_check
        %p137 = pneg %p91
      $region18: #{spdconv2d_forward.3} parent=11 // pred_check_branch
        %139 = sbr.rel (%p137) target = $region20
      $region19: #{spdconv2d_forward.3} parent=11 // pred_region
        _
      $region20: #{spdconv2d_forward.3} parent=11 // pred_fallthru
        _
    $region12: #{spdconv2d_forward.3} parent=5 // pred_fallthru
      _
    %p140 = scmp.lt.s32.totalorder %s9, 2
    // Predicated region
    $region21: #{spdconv2d_forward.3} parent=5 // pred_check
      %p141 = pneg %p140
    $region22: #{spdconv2d_forward.3} parent=5 // pred_check_branch
      %143 = sbr.rel (%p141) target = $region24
    $region23: #{spdconv2d_forward.3} parent=5 // pred_region
      // Predicated region
      $region25: #{spdconv2d_forward.3} parent=23 // pred_check
        %p144 = pneg %p43
      $region26: #{spdconv2d_forward.3} parent=23 // pred_check_branch
        %146 = sbr.rel (%p144) target = $region28
      $region27: #{spdconv2d_forward.3} parent=23 // pred_region
        %p147 = scmp.lt.s32.totalorder %s16, 1
        %s148 = scalar_select %p147, %s16, 1
        %p149 = scmp.lt.s32.totalorder %s17, 0
        %s150 = scalar_select %p149, %s17, 0
        %s151 = smul.addr %s148, 2
        %s152 = sadd.s32 %s150, %s151
        %s153 = smul.addr %s152, 4
        %s154 = scalar_lea.vmem %s0, %s153
      $region28: #{spdconv2d_forward.3} parent=23 // pred_fallthru
        _
    $region24: #{spdconv2d_forward.3} parent=5 // pred_fallthru
      _
    %p155 = scmp.le.s32.totalorder 1, %s9
    %p156 = scmp.lt.s32.totalorder %s9, 3
    %p157 = pnand %p155, %p156
    %p158 = pneg %p157
    // Predicated region
    $region29: #{spdconv2d_forward.3} parent=5 // pred_check
      _
    $region30: #{spdconv2d_forward.3} parent=5 // pred_check_branch
      %160 = sbr.rel (%p157) target = $region32
    $region31: #{spdconv2d_forward.3} parent=5 // pred_region
      %s161 = ssub.s32 %s9, 1
      %p162 = scmp.lt.s32.totalorder %s18, 1
      %s163 = scalar_select %p162, %s18, 1
      %p164 = scmp.lt.s32.totalorder %s19, 0
      %s165 = scalar_select %p164, %s19, 0
      %s166 = smul.addr %s163, 2
      %s167 = sadd.s32 %s165, %s166
      %s168 = smul.addr %s167, 4
      %s169 = scalar_lea.vmem %s0, %s168
      %p170 = pneg %p49
      %p171 = pneg %p46
      %p172 = pneg %p70
      %p173 = pneg %p67
      %p174 = pneg %p91
      %p175 = pneg %p88
      %p176 = pneg %p119
      %p177 = pneg %p116
      %p178 = scmp.lt.s32.totalorder %s18, 1
      %s179 = scalar_select %p178, %s18, 1
      %p180 = scmp.lt.s32.totalorder %s19, 0
      %s181 = scalar_select %p180, %s19, 0
      %s182 = sadd.s32 %s181, %s179
      %s183 = smul.addr %s182, 8
      %s184 = scalar_lea.vmem %s3, %s183
      %p185 = scmp.lt.s32.totalorder %s18, 1
      %s186 = scalar_select %p185, %s18, 1
      %p187 = scmp.lt.s32.totalorder %s19, 0
      %s188 = scalar_select %p187, %s19, 0
      %s189 = smul.addr %s186, 2
      %s190 = sadd.s32 %s188, %s189
      %s191 = smul.addr %s190, 4
      %s192 = scalar_lea.vmem %s0, %s191
      %p193 = scmp.lt.s32.totalorder %s18, 1
      %s194 = scalar_select %p193, %s18, 1
      %p195 = scmp.lt.s32.totalorder %s19, 0
      %s196 = scalar_select %p195, %s19, 0
      %s197 = sadd.s32 %s196, %s194
      %s198 = smul.addr %s197, 8
      %s199 = scalar_lea.vmem %s3, %s198
      %v201 = vld [vmem:[%s1] sm:$0xf]
      %v202 = vld [vmem:[%s192] sm:$0xf]
      %v203 = vld [vmem:[%s192 + $0x4] sm:$0xf]
      %v206 = vunpack.c.l.b16 %v202
      %v207 = vunpack.c.l.b16 %v203
      %v208 = vpack.c.b16 %v207, %v206
      %vm210 = vcmask 130048
      %v212 = vsel %vm210, %v201, 0
      %214 = vmatprep.subr.bf16.mxu0 0
      %215 = vmatpush1.bf16.msra.mxu0 %v208
      %216 = vmatprep.subr.bf16.mxu0 0
      %217 = vmatpush1.bf16.msra.mxu0 0
      %218 = vmatprep.subr.bf16.mxu0 0
      %219 = vmatpush1.bf16.msra.mxu0 0
      %220 = vmatprep.subr.bf16.mxu0 0
      %221 = vmatpush1.bf16.msra.mxu0 0
      %222 = vmatprep.subr.bf16.mxu0 0
      %223 = vmatpush1.bf16.msra.mxu0 0
      %224 = vmatprep.subr.bf16.mxu0 0
      %225 = vmatpush1.bf16.msra.mxu0 0
      %226 = vmatprep.subr.bf16.mxu0 0
      %227 = vmatpush1.bf16.msra.mxu0 0
      %228 = vmatprep.subr.bf16.mxu0 0
      %229 = vmatpush1.bf16.msra.mxu0 0
      %230 = vmatprep.subr.bf16.mxu0 0
      %231 = vmatpush1.bf16.msra.mxu0 0
      %232 = vmatprep.subr.bf16.mxu0 0
      %233 = vmatpush1.bf16.msra.mxu0 0
      %234 = vmatprep.subr.bf16.mxu0 0
      %235 = vmatpush1.bf16.msra.mxu0 0
      %236 = vmatprep.subr.bf16.mxu0 0
      %237 = vmatpush1.bf16.msra.mxu0 0
      %238 = vmatprep.subr.bf16.mxu0 0
      %239 = vmatpush1.bf16.msra.mxu0 0
      %240 = vmatprep.subr.bf16.mxu0 0
      %241 = vmatpush1.bf16.msra.mxu0 0
      %242 = vmatprep.subr.bf16.mxu0 0
      %243 = vmatpush1.bf16.msra.mxu0 0
      %244 = vmatprep.subr.bf16.mxu0 0
      %245 = vmatpush1.bf16.msra.mxu0 0
      %246 = vmatprep.mubr.bf16.mxu0 0
      %247 = vmatmul.mubr.bf16.gmra.mrb[0].mxu0 %v212
      %v248 = vpop.f32.mrb[0].mxu0
      %v249 = vadd.f32 0.0, %v248
      %v250 = vpop.f32.mrb[0].mxu0
      %v251 = vpop.f32.mrb[0].mxu0
      %v252 = vpop.f32.mrb[0].mxu0
      %253 = vdwg.mxu0
      %v254 = vld [vmem:[%s2] sm:$0xff]
      %256 = vset.pattern.permute.xlu0 0
      %257 = vperm.xlu0 %256, %v254
      %v258 = vpop.permute.xlu0 %257
      %v260 = vmul.f32 %v249, %v258
      %261 = vset.pattern.permute.xlu0 1
      %262 = vperm.xlu0 %261, %v254
      %v263 = vpop.permute.xlu0 %262
      %v265 = vadd.f32 %v260, %v263
      %v266 = vmax.f32 %v265, 0.0
      %267 = vst [vmem:[%s199] sm:$0xff] %v266
      %p268 = scmp.lt.s32.totalorder %s18, 1
      %s269 = scalar_select %p268, %s18, 1
      %p270 = scmp.lt.s32.totalorder %s19, 0
      %s271 = scalar_select %p270, %s19, 0
      %s272 = sadd.s32 %s271, %s269
      %s273 = smul.addr %s272, 8
      %s274 = scalar_lea.vmem %s3, %s273
      // Predicated region
      $region33: #{spdconv2d_forward.3} parent=31 // pred_check
        %p275 = pneg %p116
      $region34: #{spdconv2d_forward.3} parent=31 // pred_check_branch
        %277 = sbr.rel (%p275) target = $region36
      $region35: #{spdconv2d_forward.3} parent=31 // pred_region
        _
      $region36: #{spdconv2d_forward.3} parent=31 // pred_fallthru
        _
    $region32: #{spdconv2d_forward.3} parent=5 // pred_fallthru
      _
    %p278 = scmp.le.s32.totalorder 2, %s9
    // Predicated region
    $region37: #{spdconv2d_forward.3} parent=5 // pred_check
      %p279 = pneg %p278
    $region38: #{spdconv2d_forward.3} parent=5 // pred_check_branch
      %281 = sbr.rel (%p279) target = $region40
    $region39: #{spdconv2d_forward.3} parent=5 // pred_region
      %s282 = ssub.s32 %s9, 2
      // Predicated region
      $region41: #{spdconv2d_forward.3} parent=39 // pred_check
        %p283 = pneg %p122
      $region42: #{spdconv2d_forward.3} parent=39 // pred_check_branch
        %285 = sbr.rel (%p283) target = $region44
      $region43: #{spdconv2d_forward.3} parent=39 // pred_region
        %p286 = scmp.lt.s32.totalorder %s20, 1
        %s287 = scalar_select %p286, %s20, 1
        %p288 = scmp.lt.s32.totalorder %s21, 0
        %s289 = scalar_select %p288, %s21, 0
        %s290 = sadd.s32 %s289, %s287
        %s291 = smul.addr %s290, 8
        %s292 = scalar_lea.vmem %s3, %s291
      $region44: #{spdconv2d_forward.3} parent=39 // pred_fallthru
        _
    $region40: #{spdconv2d_forward.3} parent=5 // pred_fallthru
      _
  $region6: #{spdconv2d_forward.3} parent=0 // loop_footer
    %s13 = sadd.s32 1, %s9
  $region7: #{spdconv2d_forward.3} parent=0 // loop_footer_branch
    %8 = sbr.rel target = $region3
  $region8: #{spdconv2d_forward.3} parent=0 // loop_exit
    _

// kernel: spdconv2d_forward.2
$region0: #{spdconv2d_forward.2}
  #allocation0 [shape = 'u32[]', space=smem, size = 0x4, offset = 0x4, fixed_abs, tag = 'smem constant byte address 0x4 - core index']
  #allocation1 [shape = 'u32[144,128]{1,0:T(1,128)}', space=vmem, size = 0x12000, scoped, tag = 'internal scratch']
  %s0 = inlined_call_operand.vmem [shape: bf16[2,16,128], index: 0, kind: input, shape index: {}]
  %s1 = inlined_call_operand.vmem [shape: bf16[8,16], index: 1, kind: input, shape index: {}]
  %s2 = inlined_call_operand.vmem [shape: f32[2,8,1], index: 2, kind: output, shape index: {0}]
  %s3 = inlined_call_operand.vmem [shape: f32[2,8,1], index: 3, kind: output, shape index: {1}]
  %4 = xla_tuple %s2, %s3
  %s5 = sld [smem:[#allocation0]]
  $region57: #{spdconv2d_forward.2} parent=0
    _
  %s7 = ssub.s32 1, %s5
  %s8 = scalar_select 0, %s7, %s5
  loop: start=0, step=1, limit=4
  $region2: #{spdconv2d_forward.2} parent=0 // loop_pre_header
    _
  $region3: #{spdconv2d_forward.2} parent=0 // loop_header
    %s10 = sphi 0, %s14
    %p11 = scmp.ge.s32.totalorder %s10, 4
    %s17 = sphi 0, %s29
    %s18 = sphi 0, %s25
    %s19 = sphi 0, %s17
    %s20 = sphi 0, %s18
    %s21 = sphi 0, %s19
    %s22 = sphi 0, %s20
    %s34 = sphi 0, %s36
    %s37 = sphi 0, %s34
    %s38 = sphi 0, %s37
    %s54 = sphi 0, %s38
    %s58 = sphi 0, %s58
    %s60 = sphi 0, %s58
    %s61 = sphi 0, %s60
    %s75 = sphi 0, %s61
    %s81 = sphi 0, %s83
    %s84 = sphi 0, %s81
    %s85 = sphi 0, %s84
    %s101 = sphi 0, %s85
    %s107 = sphi 0, %s109
    %s110 = sphi 0, %s107
    %s111 = sphi 0, %s110
    %s127 = sphi 0, %s111
  $region4: #{spdconv2d_forward.2} parent=0 // loop_header_branch
    %13 = sbr.rel (%p11) target = $region8
  $region5: #{spdconv2d_forward.2} parent=0 // loop_body
    %s15 = ssub.s32 %s10, 1
    %s16 = ssub.s32 %s10, 2
    %s23 = sadd.s32 1, %s18
    %p24 = scmp.ge.s32.totalorder %s23, 1
    %s25 = scalar_select %p24, 0, %s23
    %s26 = sadd.s32 1, %s17
    %s27 = scalar_select %p24, %s26, %s17
    %p28 = scmp.ge.s32.totalorder %s27, 2
    %s29 = scalar_select %p28, 0, %s27
    %s30 = ssub.s32 %s17, %s29
    %s31 = ssub.s32 %s18, %s25
    %s32 = sor.u32 %s30, %s31
    %p33 = scmp.eq.s32.totalorder %s32, 0
    %s35 = sadd.s32 %s34, 1
    %s36 = scalar_select %p33, %s34, %s35
    %p39 = pneg %p33
    %p40 = scmp.eq.s32.totalorder %s10, 1
    %p41 = por %p39, %p40
    %p42 = scmp.ne.s32.totalorder %s34, %s37
    %p43 = scmp.eq.s32.totalorder %s10, 0
    %p44 = por %p42, %p43
    %p45 = scmp.ne.s32.totalorder %s34, %s37
    %p46 = scmp.eq.s32.totalorder %s15, 1
    %p47 = por %p45, %p46
    %p48 = scmp.ne.s32.totalorder %s37, %s38
    %p49 = scmp.eq.s32.totalorder %s15, 0
    %p50 = por %p48, %p49
    %p51 = scmp.ne.s32.totalorder %s37, %s38
    %p52 = scmp.eq.s32.totalorder %s16, 1
    %p53 = por %p51, %p52
    %p55 = scmp.ne.s32.totalorder %s38, %s54
    %p56 = scmp.eq.s32.totalorder %s16, 0
    %p57 = por %p55, %p56
    %s59 = sadd.s32 %s58, 1
    %p62 = scmp.eq.s32.totalorder %s10, 1
    %p63 = scmp.ne.s32.totalorder %s58, %s60
    %p64 = scmp.eq.s32.totalorder %s10, 0
    %p65 = por %p63, %p64
    %p66 = scmp.ne.s32.totalorder %s58, %s60
    %p67 = scmp.eq.s32.totalorder %s15, 1
    %p68 = por %p66, %p67
    %p69 = scmp.ne.s32.totalorder %s60, %s61
    %p70 = scmp.eq.s32.totalorder %s15, 0
    %p71 = por %p69, %p70
    %p72 = scmp.ne.s32.totalorder %s60, %s61
    %p73 = scmp.eq.s32.totalorder %s16, 1
    %p74 = por %p72, %p73
    %p76 = scmp.ne.s32.totalorder %s61, %s75
    %p77 = scmp.eq.s32.totalorder %s16, 0
    %p78 = por %p76, %p77
    %s79 = ssub.s32 %s17, %s29
    %p80 = scmp.eq.s32.totalorder %s79, 0
    %s82 = sadd.s32 %s81, 1
    %s83 = scalar_select %p80, %s81, %s82
    %p86 = pneg %p80
    %p87 = scmp.eq.s32.totalorder %s10, 1
    %p88 = por %p86, %p87
    %p89 = scmp.ne.s32.totalorder %s81, %s84
    %p90 = scmp.eq.s32.totalorder %s10, 0
    %p91 = por %p89, %p90
    %p92 = scmp.ne.s32.totalorder %s81, %s84
    %p93 = scmp.eq.s32.totalorder %s15, 1
    %p94 = por %p92, %p93
    %p95 = scmp.ne.s32.totalorder %s84, %s85
    %p96 = scmp.eq.s32.totalorder %s15, 0
    %p97 = por %p95, %p96
    %p98 = scmp.ne.s32.totalorder %s84, %s85
    %p99 = scmp.eq.s32.totalorder %s16, 1
    %p100 = por %p98, %p99
    %p102 = scmp.ne.s32.totalorder %s85, %s101
    %p103 = scmp.eq.s32.totalorder %s16, 0
    %p104 = por %p102, %p103
    %s105 = ssub.s32 %s17, %s29
    %p106 = scmp.eq.s32.totalorder %s105, 0
    %s108 = sadd.s32 %s107, 1
    %s109 = scalar_select %p106, %s107, %s108
    %p112 = pneg %p106
    %p113 = scmp.eq.s32.totalorder %s10, 1
    %p114 = por %p112, %p113
    %p115 = scmp.ne.s32.totalorder %s107, %s110
    %p116 = scmp.eq.s32.totalorder %s10, 0
    %p117 = por %p115, %p116
    %p118 = scmp.ne.s32.totalorder %s107, %s110
    %p119 = scmp.eq.s32.totalorder %s15, 1
    %p120 = por %p118, %p119
    %p121 = scmp.ne.s32.totalorder %s110, %s111
    %p122 = scmp.eq.s32.totalorder %s15, 0
    %p123 = por %p121, %p122
    %p124 = scmp.ne.s32.totalorder %s110, %s111
    %p125 = scmp.eq.s32.totalorder %s16, 1
    %p126 = por %p124, %p125
    %p128 = scmp.ne.s32.totalorder %s111, %s127
    %p129 = scmp.eq.s32.totalorder %s16, 0
    %p130 = por %p128, %p129
    %p131 = scmp.le.s32.totalorder 1, %s10
    %p132 = scmp.lt.s32.totalorder %s10, 3
    %p133 = pnand %p131, %p132
    %p134 = pneg %p133
    // Predicated region
    $region9: #{spdconv2d_forward.2} parent=5 // pred_check
      _
    $region10: #{spdconv2d_forward.2} parent=5 // pred_check_branch
      %136 = sbr.rel (%p133) target = $region12
    $region11: #{spdconv2d_forward.2} parent=5 // pred_region
      %s137 = ssub.s32 %s10, 1
      // Predicated region
      $region13: #{spdconv2d_forward.2} parent=11 // pred_check
        %p138 = pneg %p71
      $region14: #{spdconv2d_forward.2} parent=11 // pred_check_branch
        %140 = sbr.rel (%p138) target = $region16
      $region15: #{spdconv2d_forward.2} parent=11 // pred_region
        _
      $region16: #{spdconv2d_forward.2} parent=11 // pred_fallthru
        _
    $region12: #{spdconv2d_forward.2} parent=5 // pred_fallthru
      _
    %p141 = scmp.lt.s32.totalorder %s10, 2
    // Predicated region
    $region17: #{spdconv2d_forward.2} parent=5 // pred_check
      %p142 = pneg %p141
    $region18: #{spdconv2d_forward.2} parent=5 // pred_check_branch
      %144 = sbr.rel (%p142) target = $region20
    $region19: #{spdconv2d_forward.2} parent=5 // pred_region
      // Predicated region
      $region21: #{spdconv2d_forward.2} parent=19 // pred_check
        %p145 = pneg %p44
      $region22: #{spdconv2d_forward.2} parent=19 // pred_check_branch
        %147 = sbr.rel (%p145) target = $region24
      $region23: #{spdconv2d_forward.2} parent=19 // pred_region
        %p148 = scmp.lt.s32.totalorder %s17, 1
        %s149 = scalar_select %p148, %s17, 1
        %p150 = scmp.lt.s32.totalorder %s18, 0
        %s151 = scalar_select %p150, %s18, 0
        %s152 = smul.addr %s149, 2
        %s153 = sadd.s32 %s151, %s152
        %s154 = smul.addr %s153, 4
        %s155 = scalar_lea.vmem %s0, %s154
      $region24: #{spdconv2d_forward.2} parent=19 // pred_fallthru
        _
    $region20: #{spdconv2d_forward.2} parent=5 // pred_fallthru
      _
    %p156 = scmp.le.s32.totalorder 1, %s10
    %p157 = scmp.lt.s32.totalorder %s10, 3
    %p158 = pnand %p156, %p157
    %p159 = pneg %p158
    // Predicated region
    $region25: #{spdconv2d_forward.2} parent=5 // pred_check
      _
    $region26: #{spdconv2d_forward.2} parent=5 // pred_check_branch
      %161 = sbr.rel (%p158) target = $region28
    $region27: #{spdconv2d_forward.2} parent=5 // pred_region
      %s162 = ssub.s32 %s10, 1
      %p163 = scmp.lt.s32.totalorder %s19, 1
      %s164 = scalar_select %p163, %s19, 1
      %p165 = scmp.lt.s32.totalorder %s20, 0
      %s166 = scalar_select %p165, %s20, 0
      %s167 = smul.addr %s164, 2
      %s168 = sadd.s32 %s166, %s167
      %s169 = smul.addr %s168, 4
      %s170 = scalar_lea.vmem %s0, %s169
      %p171 = pneg %p50
      %p172 = pneg %p47
      %p173 = pneg %p71
      %p174 = pneg %p68
      %p175 = pneg %p97
      %p176 = pneg %p94
      %p177 = scmp.lt.s32.totalorder %s19, 1
      %s178 = scalar_select %p177, %s19, 1
      %s179 = smul.addr %s178, 8
      %s180 = scalar_lea.vmem %s2, %s179
      %p181 = pneg %p123
      %p182 = pneg %p120
      %p183 = scmp.lt.s32.totalorder %s19, 1
      %s184 = scalar_select %p183, %s19, 1
      %s185 = smul.addr %s184, 8
      %s186 = scalar_lea.vmem %s3, %s185
      %p187 = scmp.lt.s32.totalorder %s19, 1
      %s188 = scalar_select %p187, %s19, 1
      %p189 = scmp.lt.s32.totalorder %s20, 0
      %s190 = scalar_select %p189, %s20, 0
      %s191 = smul.addr %s188, 2
      %s192 = sadd.s32 %s190, %s191
      %s193 = smul.addr %s192, 4
      %s194 = scalar_lea.vmem %s0, %s193
      %p195 = scmp.lt.s32.totalorder %s19, 1
      %s196 = scalar_select %p195, %s19, 1
      %s197 = smul.addr %s196, 8
      %s198 = scalar_lea.vmem %s2, %s197
      %p199 = scmp.lt.s32.totalorder %s19, 1
      %s200 = scalar_select %p199, %s19, 1
      %s201 = smul.addr %s200, 8
      %s202 = scalar_lea.vmem %s3, %s201
      %v204 = vld [vmem:[%s1] sm:$0xf]
      %v205 = vld [vmem:[%s194] sm:$0xf]
      %v206 = vld [vmem:[%s194 + $0x4] sm:$0xf]
      %v209 = vunpack.c.l.b16 %v205
      %v210 = vunpack.c.l.b16 %v206
      %v211 = vpack.c.b16 %v210, %v209
      %vm213 = vcmask 130048
      %v215 = vsel %vm213, %v204, 0
      %217 = vmatprep.subr.bf16.mxu0 0
      %218 = vmatpush1.bf16.msra.mxu0 %v211
      %219 = vmatprep.subr.bf16.mxu0 0
      %220 = vmatpush1.bf16.msra.mxu0 0
      %221 = vmatprep.subr.bf16.mxu0 0
      %222 = vmatpush1.bf16.msra.mxu0 0
      %223 = vmatprep.subr.bf16.mxu0 0
      %224 = vmatpush1.bf16.msra.mxu0 0
      %225 = vmatprep.subr.bf16.mxu0 0
      %226 = vmatpush1.bf16.msra.mxu0 0
      %227 = vmatprep.subr.bf16.mxu0 0
      %228 = vmatpush1.bf16.msra.mxu0 0
      %229 = vmatprep.subr.bf16.mxu0 0
      %230 = vmatpush1.bf16.msra.mxu0 0
      %231 = vmatprep.subr.bf16.mxu0 0
      %232 = vmatpush1.bf16.msra.mxu0 0
      %233 = vmatprep.subr.bf16.mxu0 0
      %234 = vmatpush1.bf16.msra.mxu0 0
      %235 = vmatprep.subr.bf16.mxu0 0
      %236 = vmatpush1.bf16.msra.mxu0 0
      %237 = vmatprep.subr.bf16.mxu0 0
      %238 = vmatpush1.bf16.msra.mxu0 0
      %239 = vmatprep.subr.bf16.mxu0 0
      %240 = vmatpush1.bf16.msra.mxu0 0
      %241 = vmatprep.subr.bf16.mxu0 0
      %242 = vmatpush1.bf16.msra.mxu0 0
      %243 = vmatprep.subr.bf16.mxu0 0
      %244 = vmatpush1.bf16.msra.mxu0 0
      %245 = vmatprep.subr.bf16.mxu0 0
      %246 = vmatpush1.bf16.msra.mxu0 0
      %247 = vmatprep.subr.bf16.mxu0 0
      %248 = vmatpush1.bf16.msra.mxu0 0
      %249 = vmatprep.mubr.bf16.mxu0 0
      %250 = vmatmul.mubr.bf16.gmra.mrb[0].mxu0 %v215
      %v251 = vpop.f32.mrb[0].mxu0
      %v252 = vadd.f32 0.0, %v251
      %v253 = vpop.f32.mrb[0].mxu0
      %v254 = vpop.f32.mrb[0].mxu0
      %v255 = vpop.f32.mrb[0].mxu0
      %256 = vdwg.mxu0
      %257 = vadd.xlane.f32.xlu0 %v252
      %v258 = vpop.xlane.xlu0 %257
      %v259 = vmul.f32 %v252, %v252
      %260 = vadd.xlane.f32.xlu0 %v259
      %v261 = vpop.xlane.xlu0 %260
      %p262 = scmp.eq.s32.totalorder %s20, 0
      // Predicated region
      $region29: #{spdconv2d_forward.2} parent=27 // pred_check
        %p263 = pneg %p262
      $region30: #{spdconv2d_forward.2} parent=27 // pred_check_branch
        %265 = sbr.rel (%p263) target = $region32
      $region31: #{spdconv2d_forward.2} parent=27 // pred_region
        %vm266 = vcmask 7168
        %267 = vst.msk [vmem:[%s198] sm:$0xff] %vm266, %v258
        %268 = vst.msk [vmem:[%s202] sm:$0xff] %vm266, %v261
      $region32: #{spdconv2d_forward.2} parent=27 // pred_fallthru
        _
      %p269 = scmp.gt.s32.totalorder %s20, 0
      // Predicated region
      $region33: #{spdconv2d_forward.2} parent=27 // pred_check
        %p270 = pneg %p269
      $region34: #{spdconv2d_forward.2} parent=27 // pred_check_branch
        %272 = sbr.rel (%p270) target = $region36
      $region35: #{spdconv2d_forward.2} parent=27 // pred_region
        %v273 = vld [vmem:[%s198] sm:$0xff]
        %v274 = vadd.f32 %v273, %v258
        %vm275 = vcmask 7168
        %276 = vst.msk [vmem:[%s198] sm:$0xff] %vm275, %v274
        %v277 = vld [vmem:[%s202] sm:$0xff]
        %v278 = vadd.f32 %v277, %v261
        %279 = vst.msk [vmem:[%s202] sm:$0xff] %vm275, %v278
      $region36: #{spdconv2d_forward.2} parent=27 // pred_fallthru
        _
      %p280 = scmp.lt.s32.totalorder %s19, 1
      %s281 = scalar_select %p280, %s19, 1
      %s282 = smul.addr %s281, 8
      %s283 = scalar_lea.vmem %s2, %s282
      %p284 = scmp.lt.s32.totalorder %s19, 1
      %s285 = scalar_select %p284, %s19, 1
      %s286 = smul.addr %s285, 8
      %s287 = scalar_lea.vmem %s3, %s286
      // Predicated region
      $region37: #{spdconv2d_forward.2} parent=27 // pred_check
        %p288 = pneg %p94
      $region38: #{spdconv2d_forward.2} parent=27 // pred_check_branch
        %290 = sbr.rel (%p288) target = $region40
      $region39: #{spdconv2d_forward.2} parent=27 // pred_region
        _
      $region40: #{spdconv2d_forward.2} parent=27 // pred_fallthru
        _
      // Predicated region
      $region41: #{spdconv2d_forward.2} parent=27 // pred_check
        %p291 = pneg %p120
      $region42: #{spdconv2d_forward.2} parent=27 // pred_check_branch
        %293 = sbr.rel (%p291) target = $region44
      $region43: #{spdconv2d_forward.2} parent=27 // pred_region
        _
      $region44: #{spdconv2d_forward.2} parent=27 // pred_fallthru
        _
    $region28: #{spdconv2d_forward.2} parent=5 // pred_fallthru
      _
    %p294 = scmp.le.s32.totalorder 2, %s10
    // Predicated region
    $region45: #{spdconv2d_forward.2} parent=5 // pred_check
      %p295 = pneg %p294
    $region46: #{spdconv2d_forward.2} parent=5 // pred_check_branch
      %297 = sbr.rel (%p295) target = $region48
    $region47: #{spdconv2d_forward.2} parent=5 // pred_region
      %s298 = ssub.s32 %s10, 2
      // Predicated region
      $region49: #{spdconv2d_forward.2} parent=47 // pred_check
        %p299 = pneg %p100
      $region50: #{spdconv2d_forward.2} parent=47 // pred_check_branch
        %301 = sbr.rel (%p299) target = $region52
      $region51: #{spdconv2d_forward.2} parent=47 // pred_region
        %p302 = scmp.lt.s32.totalorder %s21, 1
        %s303 = scalar_select %p302, %s21, 1
        %s304 = smul.addr %s303, 8
        %s305 = scalar_lea.vmem %s2, %s304
      $region52: #{spdconv2d_forward.2} parent=47 // pred_fallthru
        _
      // Predicated region
      $region53: #{spdconv2d_forward.2} parent=47 // pred_check
        %p306 = pneg %p126
      $region54: #{spdconv2d_forward.2} parent=47 // pred_check_branch
        %308 = sbr.rel (%p306) target = $region56
      $region55: #{spdconv2d_forward.2} parent=47 // pred_region
        %p309 = scmp.lt.s32.totalorder %s21, 1
        %s310 = scalar_select %p309, %s21, 1
        %s311 = smul.addr %s310, 8
        %s312 = scalar_lea.vmem %s3, %s311
      $region56: #{spdconv2d_forward.2} parent=47 // pred_fallthru
        _
    $region48: #{spdconv2d_forward.2} parent=5 // pred_fallthru
      _
  $region6: #{spdconv2d_forward.2} parent=0 // loop_footer
    %s14 = sadd.s32 1, %s10
  $region7: #{spdconv2d_forward.2} parent=0 // loop_footer_branch
    %9 = sbr.rel target = $region3
  $region8: #{spdconv2d_forward.2} parent=0 // loop_exit
    _

</llo_original>
